<compile_context>
chip_gen: v5e
topology: v5e:2x2
jax: 0.10.0
libtpu: 0.0.40
codegen_flags: <defaults>
</compile_context>

<pallas_src>
import functools

import numpy as np

import jax
import jax.numpy as jnp
from jax.experimental import pallas as pl
from jax.experimental.pallas import tpu as pltpu

# ---------------- model hyper-parameters (small, deterministic) --------------
OUTPUT_SIZE = 4
VOCAB_SIZE = 50
EMBEDDING_DIM = 32
PADDING_IDX = 0
N_FILTERS = 8
FILTER_SIZES = (2, 3, 4)
DROPOUT = 0.5          # unused at eval time
SEQ_LEN = 16
BATCH = 2


# ------------------------------- Pallas kernel -------------------------------
def _textcnn_kernel(ids_ref,        # (B*S + max_fs-1, 1) int32 token ids (batch-major, padded)
                    table_ref,      # (V, E)              embedding table
                    wpack_ref,      # (max_fs*E, 3*NF)    packed conv weights (zero rows for short filters)
                    bpack_ref,      # (1, 3*NF)           packed conv biases
                    scale_ref,      # (B*S, 3*NF)         valid-position mask * 1/L per filter
                    pool_ref,       # (B, B*S)            per-sample sum-pooling matrix
                    wlin_ref,       # (3*NF, OUT)         linear weight (pre-transposed)
                    blin_ref,       # (1, OUT)            linear bias
                    out_ref,        # (B, OUT)
                    *, bs, vocab, max_fs):
    n_pad = bs + max_fs - 1

    # 1) Fused embedding gather: one-hot (B*S+3, V) @ (V, E) on the MXU.
    ids = ids_ref[...]                                            # (n_pad, 1) int32
    vocab_iota = jax.lax.broadcasted_iota(jnp.int32, (n_pad, vocab), 1)
    onehot = (ids == vocab_iota).astype(jnp.float32)              # (n_pad, V)
    emb_ext = jnp.dot(onehot, table_ref[...],
                      preferred_element_type=jnp.float32)         # (n_pad, E)

    # 2) Sliding windows: lane block k of row j holds embedding row j+k.
    #    (rows that spill across a sample boundary / into padding are zeroed
    #     later by scale_ref, so they never contribute to the pooled mean)
    windows = jnp.concatenate(
        [emb_ext[k:k + bs, :] for k in range(max_fs)], axis=1)    # (B*S, max_fs*E = 128)

    # 3) All three convolutions as a single K=128 MXU contraction.
    conv = jnp.dot(windows, wpack_ref[...],
                   preferred_element_type=jnp.float32)            # (B*S, 3*NF)

    # 4) bias + ReLU, then avg-pool as mask*(1/L) scale + per-sample pooling matmul.
    act = jnp.maximum(conv + bpack_ref[...], 0.0) * scale_ref[...]
    pooled = jnp.dot(pool_ref[...], act,
                     preferred_element_type=jnp.float32)          # (B, 3*NF)

    # 5) Linear head (dropout is identity in eval mode).
    out_ref[...] = jnp.dot(pooled, wlin_ref[...],
                           preferred_element_type=jnp.float32) + blin_ref[...]


# --------------------------- one-time weight packing --------------------------
def pack_params(params):
    """Repack PyTorch-layout params into the kernel's fused layouts (one time)."""
    E, NF = EMBEDDING_DIM, N_FILTERS
    C = NF * len(FILTER_SIZES)
    max_fs = max(FILTER_SIZES)

    wpack = np.zeros((max_fs * E, C), np.float32)
    bpack = np.zeros((1, C), np.float32)
    for i, fs in enumerate(FILTER_SIZES):
        w = np.asarray(params[f"conv{i}_w"])                      # (fs, E, NF)
        wpack[:fs * E, i * NF:(i + 1) * NF] = w.reshape(fs * E, NF)
        bpack[0, i * NF:(i + 1) * NF] = np.asarray(params[f"conv{i}_b"]).reshape(NF)

    return {
        "embedding": params["embedding"],                         # (V, E)
        "wpack": jnp.asarray(wpack),                              # (max_fs*E, C)
        "bpack": jnp.asarray(bpack),                              # (1, C)
        "linear_w": params["linear_w"],                           # (C, OUT)
        "linear_b": params["linear_b"],                           # (1, OUT)
    }


# ------------------------------- JAX wrapper ----------------------------------
def textcnn_v2_forward(text_ids, packed):
    """text_ids: (S, B) int32 token ids (torchtext 'seq-first' convention)."""
    S, B = text_ids.shape
    NF = N_FILTERS
    C = NF * len(FILTER_SIZES)
    max_fs = max(FILTER_SIZES)
    BS = B * S

    # Token ids, batch-major flattened, padded by max_fs-1 trailing padding ids.
    ids = jnp.concatenate(
        [text_ids.astype(jnp.int32).T.reshape(BS, 1),
         jnp.full((max_fs - 1, 1), PADDING_IDX, jnp.int32)], axis=0)

    # Trace-time constants: valid-position mask * 1/L, and per-sample pooling matrix.
    scale = np.zeros((BS, C), np.float32)
    for i, fs in enumerate(FILTER_SIZES):
        L = S - fs + 1
        for b in range(B):
            scale[b * S: b * S + L, i * NF:(i + 1) * NF] = 1.0 / L
    poolmat = np.zeros((B, BS), np.float32)
    for b in range(B):
        poolmat[b, b * S:(b + 1) * S] = 1.0

    kernel = functools.partial(_textcnn_kernel, bs=BS,
                               vocab=packed["embedding"].shape[0],
                               max_fs=max_fs)

    vmem = pl.BlockSpec(memory_space=pltpu.MemorySpace.VMEM)
    out = pl.pallas_call(
        kernel,
        out_shape=jax.ShapeDtypeStruct((B, OUTPUT_SIZE), jnp.float32),
        in_specs=[vmem] * 8,
        out_specs=vmem,
    )(ids, packed["embedding"], packed["wpack"], packed["bpack"],
      jnp.asarray(scale), jnp.asarray(poolmat),
      packed["linear_w"], packed["linear_b"])
    return out


# --------------------------- pure-JAX reference -------------------------------
def textcnn_v2_reference(text_ids, params):
    emb = params["embedding"][text_ids]                           # (S, B, E)
    emb = jnp.transpose(emb, (1, 0, 2))                           # (B, S, E)
    B, S, E = emb.shape
    pooled = []
    for i, fs in enumerate(FILTER_SIZES):
        w = params[f"conv{i}_w"]                                  # (fs, E, NF)
        bias = params[f"conv{i}_b"]                               # (1, NF)
        L = S - fs + 1
        acc = jnp.zeros((B, L, N_FILTERS), jnp.float32)
        for k in range(fs):
            acc = acc + jnp.einsum("ble,ef->blf", emb[:, k:k + L, :], w[k])
        acc = jnp.maximum(acc + bias[None], 0.0)
        pooled.append(jnp.mean(acc, axis=1))                      # (B, NF)
    feat = jnp.concatenate(pooled, axis=-1)
    return feat @ params["linear_w"] + params["linear_b"]


# ---------------------------- deterministic init ------------------------------
def init_params(key):
    keys = jax.random.split(key, 3 + 2 * len(FILTER_SIZES))
    params = {}
    emb = 0.1 * jax.random.normal(keys[0], (VOCAB_SIZE, EMBEDDING_DIM), jnp.float32)
    emb = emb.at[PADDING_IDX].set(0.0)            # nn.Embedding padding_idx row = 0
    params["embedding"] = emb
    for i, fs in enumerate(FILTER_SIZES):
        # PyTorch Conv2d weight (NF, 1, fs, E) -> stored as (fs, E, NF)
        params[f"conv{i}_w"] = 0.1 * jax.random.normal(
            keys[1 + 2 * i], (fs, EMBEDDING_DIM, N_FILTERS), jnp.float32)
        params[f"conv{i}_b"] = 0.1 * jax.random.normal(
            keys[2 + 2 * i], (1, N_FILTERS), jnp.float32)
    # PyTorch Linear weight (OUT, NF*3) -> stored transposed (NF*3, OUT)
    params["linear_w"] = 0.1 * jax.random.normal(
        keys[-2], (N_FILTERS * len(FILTER_SIZES), OUTPUT_SIZE), jnp.float32)
    params["linear_b"] = 0.1 * jax.random.normal(
        keys[-1], (1, OUTPUT_SIZE), jnp.float32)
    return params


if __name__ == "__main__":
    key = jax.random.PRNGKey(0)
    pkey, tkey = jax.random.split(key)
    params = init_params(pkey)
    packed = pack_params(params)

    # batch.text: (seq_len, batch) int token ids, with some padding tokens
    text_ids = jax.random.randint(tkey, (SEQ_LEN, BATCH), 0, VOCAB_SIZE, jnp.int32)
    text_ids = text_ids.at[-2:, :].set(PADDING_IDX)

    out = textcnn_v2_forward(text_ids, packed)
    out = jax.block_until_ready(out)

    ref = textcnn_v2_reference(text_ids, params)
    assert out.shape == (BATCH, OUTPUT_SIZE)
    assert jnp.allclose(out, ref, atol=1e-4, rtol=1e-4), (out, ref)

    print("KERNEL_OK")
</pallas_src>

<mosaic_0001>
module attributes {stable_mosaic.version = 11 : i64} {
  func.func @_textcnn_kernel(%arg0: memref<35x1xi32, #tpu.memory_space<vmem>>, %arg1: memref<50x32xf32, #tpu.memory_space<vmem>>, %arg2: memref<128x24xf32, #tpu.memory_space<vmem>>, %arg3: memref<1x24xf32, #tpu.memory_space<vmem>>, %arg4: memref<32x24xf32, #tpu.memory_space<vmem>>, %arg5: memref<2x32xf32, #tpu.memory_space<vmem>>, %arg6: memref<24x4xf32, #tpu.memory_space<vmem>>, %arg7: memref<1x4xf32, #tpu.memory_space<vmem>>, %arg8: memref<2x4xf32, #tpu.memory_space<vmem>>) attributes {dimension_semantics = [], scalar_prefetch = 0 : i64, scratch_operands = 0 : i64, tpu.core_type = #tpu.core_type<tc>} {
    %c0 = arith.constant 0 : index
    %c0_0 = arith.constant 0 : index
    %0 = vector.load %arg0[%c0, %c0_0] : memref<35x1xi32, #tpu.memory_space<vmem>>, vector<35x1xi32>
    %1 = tpu.iota {dimensions = array<i32: 1>} : vector<35x50xi32>
    %2 = vector.broadcast %0 : vector<35x1xi32> to vector<35x50xi32>
    %3 = arith.cmpi eq, %2, %1 : vector<35x50xi32>
    %4 = arith.extui %3 : vector<35x50xi1> to vector<35x50xi32>
    %5 = arith.sitofp %4 : vector<35x50xi32> to vector<35x50xf32>
    %c0_1 = arith.constant 0 : index
    %c0_2 = arith.constant 0 : index
    %6 = vector.load %arg1[%c0_1, %c0_2] : memref<50x32xf32, #tpu.memory_space<vmem>>, vector<50x32xf32>
    %cst = arith.constant dense<0.000000e+00> : vector<35x32xf32>
    %7 = tpu.matmul %5, %6, %cst {dimension_numbers = #tpu.dot_dimension_numbers<[1], [0], [0], [1], [0, 0, 1, 1], [], []>} : vector<35x50xf32>, vector<50x32xf32>, vector<35x32xf32> -> vector<35x32xf32>
    %8 = vector.extract_strided_slice %7 {offsets = [0, 0], sizes = [32, 32], strides = [1, 1]} : vector<35x32xf32> to vector<32x32xf32>
    %9 = vector.extract_strided_slice %7 {offsets = [1, 0], sizes = [32, 32], strides = [1, 1]} : vector<35x32xf32> to vector<32x32xf32>
    %10 = vector.extract_strided_slice %7 {offsets = [2, 0], sizes = [32, 32], strides = [1, 1]} : vector<35x32xf32> to vector<32x32xf32>
    %11 = vector.extract_strided_slice %7 {offsets = [3, 0], sizes = [32, 32], strides = [1, 1]} : vector<35x32xf32> to vector<32x32xf32>
    %12 = tpu.concatenate %8, %9, %10, %11 in 1 : vector<32x32xf32>, vector<32x32xf32>, vector<32x32xf32>, vector<32x32xf32> -> vector<32x128xf32>
    %c0_3 = arith.constant 0 : index
    %c0_4 = arith.constant 0 : index
    %13 = vector.load %arg2[%c0_3, %c0_4] : memref<128x24xf32, #tpu.memory_space<vmem>>, vector<128x24xf32>
    %cst_5 = arith.constant dense<0.000000e+00> : vector<32x24xf32>
    %14 = tpu.matmul %12, %13, %cst_5 {dimension_numbers = #tpu.dot_dimension_numbers<[1], [0], [0], [1], [0, 0, 1, 1], [], []>} : vector<32x128xf32>, vector<128x24xf32>, vector<32x24xf32> -> vector<32x24xf32>
    %c0_6 = arith.constant 0 : index
    %c0_7 = arith.constant 0 : index
    %15 = vector.load %arg3[%c0_6, %c0_7] : memref<1x24xf32, #tpu.memory_space<vmem>>, vector<1x24xf32>
    %16 = vector.broadcast %15 : vector<1x24xf32> to vector<32x24xf32>
    %17 = arith.addf %14, %16 : vector<32x24xf32>
    %cst_8 = arith.constant 0.000000e+00 : f32
    %18 = vector.broadcast %cst_8 : f32 to vector<32x24xf32>
    %19 = arith.maximumf %17, %18 : vector<32x24xf32>
    %c0_9 = arith.constant 0 : index
    %c0_10 = arith.constant 0 : index
    %20 = vector.load %arg4[%c0_9, %c0_10] : memref<32x24xf32, #tpu.memory_space<vmem>>, vector<32x24xf32>
    %21 = arith.mulf %19, %20 : vector<32x24xf32>
    %c0_11 = arith.constant 0 : index
    %c0_12 = arith.constant 0 : index
    %22 = vector.load %arg5[%c0_11, %c0_12] : memref<2x32xf32, #tpu.memory_space<vmem>>, vector<2x32xf32>
    %cst_13 = arith.constant dense<0.000000e+00> : vector<2x24xf32>
    %23 = tpu.matmul %22, %21, %cst_13 {dimension_numbers = #tpu.dot_dimension_numbers<[1], [0], [0], [1], [0, 0, 1, 1], [], []>} : vector<2x32xf32>, vector<32x24xf32>, vector<2x24xf32> -> vector<2x24xf32>
    %c0_14 = arith.constant 0 : index
    %c0_15 = arith.constant 0 : index
    %24 = vector.load %arg6[%c0_14, %c0_15] : memref<24x4xf32, #tpu.memory_space<vmem>>, vector<24x4xf32>
    %cst_16 = arith.constant dense<0.000000e+00> : vector<2x4xf32>
    %25 = tpu.matmul %23, %24, %cst_16 {dimension_numbers = #tpu.dot_dimension_numbers<[1], [0], [0], [1], [0, 0, 1, 1], [], []>} : vector<2x24xf32>, vector<24x4xf32>, vector<2x4xf32> -> vector<2x4xf32>
    %c0_17 = arith.constant 0 : index
    %c0_18 = arith.constant 0 : index
    %26 = vector.load %arg7[%c0_17, %c0_18] : memref<1x4xf32, #tpu.memory_space<vmem>>, vector<1x4xf32>
    %27 = vector.broadcast %26 : vector<1x4xf32> to vector<2x4xf32>
    %28 = arith.addf %25, %27 : vector<2x4xf32>
    %c0_19 = arith.constant 0 : index
    %c0_20 = arith.constant 0 : index
    %29 = vector.load %arg8[%c0_19, %c0_20] : memref<2x4xf32, #tpu.memory_space<vmem>>, vector<2x4xf32>
    tpu.vector_store %arg8[%c0_19, %c0_20], %28 {strides = array<i32>} : memref<2x4xf32, #tpu.memory_space<vmem>>, vector<2x4xf32>,
    return
  }
}

</mosaic_0001>

<llo_original>
// kernel: tpu_custom_call.1
$region0: #{tpu_custom_call.1}
  #allocation0 [shape = 'u32[]', space=smem, size = 0x4, offset = 0x4, fixed_abs, tag = 'smem constant byte address 0x4 - core index']
  #allocation1 [shape = 'u32[72,128]{1,0:T(1,128)}', space=vmem, size = 0x9000, scoped, tag = 'internal scratch']
  %s0 = inlined_call_operand.vmem [shape: s32[35,1], index: 0, kind: input, shape index: {}]
  %s1 = inlined_call_operand.vmem [shape: f32[50,32], index: 1, kind: input, shape index: {}]
  %s2 = inlined_call_operand.vmem [shape: f32[128,24], index: 2, kind: input, shape index: {}]
  %s3 = inlined_call_operand.vmem [shape: f32[1,24], index: 3, kind: input, shape index: {}]
  %s4 = inlined_call_operand.vmem [shape: f32[32,24], index: 4, kind: input, shape index: {}]
  %s5 = inlined_call_operand.vmem [shape: f32[2,32], index: 5, kind: input, shape index: {}]
  %s6 = inlined_call_operand.vmem [shape: f32[24,4], index: 6, kind: input, shape index: {}]
  %s7 = inlined_call_operand.vmem [shape: f32[1,4], index: 7, kind: input, shape index: {}]
  %s8 = inlined_call_operand.hbm [shape: f32[2,4], index: 8, kind: output, shape index: {}]
  %s9 = sld [smem:[#allocation0]]
  $region42: #{tpu_custom_call.1} parent=0
    _
  %s11 = ssub.s32 1, %s9
  %s12 = scalar_select 0, %s11, %s9
  $region1: #{tpu_custom_call.1} parent=0
    #allocation2 [shape = 'u8[1024]{0}', space=vmem, size = 0x400, scoped, tag = 'output window, operand 0, single buffered']
    #allocation3 [shape = 's32[1]{0}', space=sflag, size = 0x4, scoped, tag = 'scoped memory for tpu_custom_call.1']
    %13 = vsyncpa [#allocation3], 0
    // Predicated region
    $region2: #{tpu_custom_call.1} parent=1 // pred_check
      _
    $region3: #{tpu_custom_call.1} parent=1 // pred_check_branch
      %15 = sbr.rel (0) target = $region5
    $region4: #{tpu_custom_call.1} parent=1 // pred_region
      _
    $region5: #{tpu_custom_call.1} parent=1 // pred_fallthru
      _
    // Predicated region
    $region6: #{tpu_custom_call.1} parent=1 // pred_check
      _
    $region7: #{tpu_custom_call.1} parent=1 // pred_check_branch
      %17 = sbr.rel (0) target = $region9
    $region8: #{tpu_custom_call.1} parent=1 // pred_region
      _
    $region9: #{tpu_custom_call.1} parent=1 // pred_fallthru
      _
    // Predicated region
    $region10: #{tpu_custom_call.1} parent=1 // pred_check
      _
    $region11: #{tpu_custom_call.1} parent=1 // pred_check_branch
      %19 = sbr.rel (0) target = $region13
    $region12: #{tpu_custom_call.1} parent=1 // pred_region
      _
    $region13: #{tpu_custom_call.1} parent=1 // pred_fallthru
      _
    // Predicated region
    $region14: #{tpu_custom_call.1} parent=1 // pred_check
      _
    $region15: #{tpu_custom_call.1} parent=1 // pred_check_branch
      %21 = sbr.rel (0) target = $region17
    $region16: #{tpu_custom_call.1} parent=1 // pred_region
      _
    $region17: #{tpu_custom_call.1} parent=1 // pred_fallthru
      _
    // Predicated region
    $region18: #{tpu_custom_call.1} parent=1 // pred_check
      _
    $region19: #{tpu_custom_call.1} parent=1 // pred_check_branch
      %23 = sbr.rel (0) target = $region21
    $region20: #{tpu_custom_call.1} parent=1 // pred_region
      _
    $region21: #{tpu_custom_call.1} parent=1 // pred_fallthru
      _
    // Predicated region
    $region22: #{tpu_custom_call.1} parent=1 // pred_check
      _
    $region23: #{tpu_custom_call.1} parent=1 // pred_check_branch
      %25 = sbr.rel (0) target = $region25
    $region24: #{tpu_custom_call.1} parent=1 // pred_region
      _
    $region25: #{tpu_custom_call.1} parent=1 // pred_fallthru
      _
    // Predicated region
    $region26: #{tpu_custom_call.1} parent=1 // pred_check
      _
    $region27: #{tpu_custom_call.1} parent=1 // pred_check_branch
      %27 = sbr.rel (0) target = $region29
    $region28: #{tpu_custom_call.1} parent=1 // pred_region
      _
    $region29: #{tpu_custom_call.1} parent=1 // pred_fallthru
      _
    // Predicated region
    $region30: #{tpu_custom_call.1} parent=1 // pred_check
      _
    $region31: #{tpu_custom_call.1} parent=1 // pred_check_branch
      %29 = sbr.rel (0) target = $region33
    $region32: #{tpu_custom_call.1} parent=1 // pred_region
      _
    $region33: #{tpu_custom_call.1} parent=1 // pred_fallthru
      _
    %v30 = vld [vmem:[%s0] sm:$0xff]
    %v31 = vld [vmem:[%s0 + $0x8] sm:$0xff]
    %v32 = vld [vmem:[%s0 + $0x10] sm:$0xff]
    %v33 = vld [vmem:[%s0 + $0x18] sm:$0xff]
    %v34 = vld [vmem:[%s0 + $0x20] sm:$0x7]
    %v35 = vlaneseq
    %v36 = vand.u32 %v35, 127
    %37 = vset.pattern.permute.xlu0 0
    %38 = vperm.xlu0 %37, %v30
    %v39 = vpop.permute.xlu0 %38
    %40 = vset.pattern.permute.xlu0 0
    %41 = vperm.xlu0 %40, %v31
    %v42 = vpop.permute.xlu0 %41
    %43 = vset.pattern.permute.xlu0 0
    %44 = vperm.xlu0 %43, %v32
    %v45 = vpop.permute.xlu0 %44
    %46 = vset.pattern.permute.xlu0 0
    %47 = vperm.xlu0 %46, %v33
    %v48 = vpop.permute.xlu0 %47
    %49 = vset.pattern.permute.xlu0 0
    %50 = vperm.xlu0 %49, %v34
    %v51 = vpop.permute.xlu0 %50
    %vm52 = vcmp.eq.s32.totalorder %v39, %v36
    %vm53 = vcmp.eq.s32.totalorder %v42, %v36
    %vm54 = vcmp.eq.s32.totalorder %v45, %v36
    %vm55 = vcmp.eq.s32.totalorder %v48, %v36
    %vm56 = vcmp.eq.s32.totalorder %v51, %v36
    %v57 = vsel %vm52, 1, 0
    %v58 = vsel %vm53, 1, 0
    %v59 = vsel %vm54, 1, 0
    %v60 = vsel %vm55, 1, 0
    %v61 = vsel %vm56, 1, 0
    %v62 = vcvt.s32.f32 %v57
    %v63 = vcvt.s32.f32 %v58
    %v64 = vcvt.s32.f32 %v59
    %v65 = vcvt.s32.f32 %v60
    %v66 = vcvt.s32.f32 %v61
    %v67 = vld [vmem:[%s1] sm:$0xff]
    %v68 = vld [vmem:[%s1 + $0x8] sm:$0xff]
    %v69 = vld [vmem:[%s1 + $0x10] sm:$0xff]
    %v70 = vld [vmem:[%s1 + $0x18] sm:$0xff]
    %v71 = vld [vmem:[%s1 + $0x20] sm:$0xff]
    %v72 = vld [vmem:[%s1 + $0x28] sm:$0xff]
    %v73 = vld [vmem:[%s1 + $0x30] sm:$0x3]
    %vm74 = vcmask 408576
    %v76 = vsel %vm74, %v62, 0
    %v79 = vsel %vm74, %v63, 0
    %v82 = vsel %vm74, %v64, 0
    %v85 = vsel %vm74, %v65, 0
    %v88 = vsel %vm74, %v66, 0
    %vm90 = vcmask 1041408
    %v92 = vsel %vm90, %v73, 0
    %94 = vmatpush.msra.mxu0 0.0
    %95 = vmatpush.msra.mxu0 0.0
    %96 = vmatpush.msra.mxu0 0.0
    %97 = vmatpush.msra.mxu0 0.0
    %98 = vmatpush.msra.mxu0 0.0
    %99 = vmatpush.msra.mxu0 0.0
    %100 = vmatpush.msra.mxu0 0.0
    %101 = vmatpush.msra.mxu0 0.0
    %102 = vmatpush.msra.mxu0 0.0
    %103 = vmatpush.msra.mxu0 %v92
    %104 = vmatpush.msra.mxu0 %v72
    %105 = vmatpush.msra.mxu0 %v71
    %106 = vmatpush.msra.mxu0 %v70
    %107 = vmatpush.msra.mxu0 %v69
    %108 = vmatpush.msra.mxu0 %v68
    %109 = vmatpush.msra.mxu0 %v67
    %110 = vmatmul.f32.gmra.mxu0 %v76
    %v111 = vpop.f32.mrf.mxu0
    %v112 = vadd.f32 0.0, %v111
    %113 = vmatmul.f32.gmra.mxu0 %v79
    %v114 = vpop.f32.mrf.mxu0
    %v115 = vadd.f32 0.0, %v114
    %116 = vmatmul.f32.gmra.mxu0 %v82
    %v117 = vpop.f32.mrf.mxu0
    %v118 = vadd.f32 0.0, %v117
    %119 = vmatmul.f32.gmra.mxu0 %v85
    %v120 = vpop.f32.mrf.mxu0
    %v121 = vadd.f32 0.0, %v120
    %122 = vmatmul.f32.gmra.mxu0 %v88
    %v123 = vpop.f32.mrf.mxu0
    %v124 = vadd.f32 0.0, %v123
    %125 = vdwg.mxu0
    %vm131 = vcmask 1046528
    %v132 = vrot.slane %v112, 1
    %v133 = vrot.slane %v115, 1
    %v134 = vsel %vm131, %v132, %v133
    %v135 = vrot.slane %v118, 1
    %v136 = vsel %vm131, %v133, %v135
    %v137 = vrot.slane %v121, 1
    %v138 = vsel %vm131, %v135, %v137
    %v139 = vrot.slane %v124, 1
    %v140 = vsel %vm131, %v137, %v139
    %141 = vrot.lane.b32.xlu0 %v134, 32
    %v142 = vpop.permute.xlu0 %141
    %143 = vrot.lane.b32.xlu0 %v136, 32
    %v144 = vpop.permute.xlu0 %143
    %145 = vrot.lane.b32.xlu0 %v138, 32
    %v146 = vpop.permute.xlu0 %145
    %147 = vrot.lane.b32.xlu0 %v140, 32
    %v148 = vpop.permute.xlu0 %147
    %vm153 = vcmask 1045504
    %v154 = vrot.slane %v112, 2
    %v155 = vrot.slane %v115, 2
    %v156 = vsel %vm153, %v154, %v155
    %v157 = vrot.slane %v118, 2
    %v158 = vsel %vm153, %v155, %v157
    %v159 = vrot.slane %v121, 2
    %v160 = vsel %vm153, %v157, %v159
    %v161 = vrot.slane %v124, 2
    %v162 = vsel %vm153, %v159, %v161
    %163 = vrot.lane.b32.xlu0 %v156, 64
    %v164 = vpop.permute.xlu0 %163
    %165 = vrot.lane.b32.xlu0 %v158, 64
    %v166 = vpop.permute.xlu0 %165
    %167 = vrot.lane.b32.xlu0 %v160, 64
    %v168 = vpop.permute.xlu0 %167
    %169 = vrot.lane.b32.xlu0 %v162, 64
    %v170 = vpop.permute.xlu0 %169
    %vm175 = vcmask 1044480
    %v176 = vrot.slane %v112, 3
    %v177 = vrot.slane %v115, 3
    %v178 = vsel %vm175, %v176, %v177
    %v179 = vrot.slane %v118, 3
    %v180 = vsel %vm175, %v177, %v179
    %v181 = vrot.slane %v121, 3
    %v182 = vsel %vm175, %v179, %v181
    %v183 = vrot.slane %v124, 3
    %v184 = vsel %vm175, %v181, %v183
    %185 = vrot.lane.b32.xlu0 %v178, 96
    %v186 = vpop.permute.xlu0 %185
    %187 = vrot.lane.b32.xlu0 %v180, 96
    %v188 = vpop.permute.xlu0 %187
    %189 = vrot.lane.b32.xlu0 %v182, 96
    %v190 = vpop.permute.xlu0 %189
    %191 = vrot.lane.b32.xlu0 %v184, 96
    %v192 = vpop.permute.xlu0 %191
    %vm197 = vcmask 261120
    %v198 = vsel %vm197, %v112, %v142
    %v199 = vsel %vm197, %v115, %v144
    %v200 = vsel %vm197, %v118, %v146
    %v201 = vsel %vm197, %v121, %v148
    %vm202 = vcmask 523264
    %v203 = vsel %vm202, %v198, %v164
    %v204 = vsel %vm202, %v199, %v166
    %v205 = vsel %vm202, %v200, %v168
    %v206 = vsel %vm202, %v201, %v170
    %vm207 = vcmask 785408
    %v208 = vsel %vm207, %v203, %v186
    %v209 = vsel %vm207, %v204, %v188
    %v210 = vsel %vm207, %v205, %v190
    %v211 = vsel %vm207, %v206, %v192
    %v212 = vld [vmem:[%s2] sm:$0xff]
    %v213 = vld [vmem:[%s2 + $0x8] sm:$0xff]
    %v214 = vld [vmem:[%s2 + $0x10] sm:$0xff]
    %v215 = vld [vmem:[%s2 + $0x18] sm:$0xff]
    %v216 = vld [vmem:[%s2 + $0x20] sm:$0xff]
    %v217 = vld [vmem:[%s2 + $0x28] sm:$0xff]
    %v218 = vld [vmem:[%s2 + $0x30] sm:$0xff]
    %v219 = vld [vmem:[%s2 + $0x38] sm:$0xff]
    %v220 = vld [vmem:[%s2 + $0x40] sm:$0xff]
    %v221 = vld [vmem:[%s2 + $0x48] sm:$0xff]
    %v222 = vld [vmem:[%s2 + $0x50] sm:$0xff]
    %v223 = vld [vmem:[%s2 + $0x58] sm:$0xff]
    %v224 = vld [vmem:[%s2 + $0x60] sm:$0xff]
    %v225 = vld [vmem:[%s2 + $0x68] sm:$0xff]
    %v226 = vld [vmem:[%s2 + $0x70] sm:$0xff]
    %v227 = vld [vmem:[%s2 + $0x78] sm:$0xff]
    %v228 = vld [vmem:[%s3] sm:$0x1]
    %v230 = vperm.slane %v228, 0
    %232 = vmatpush.msra.mxu0 %v227
    %233 = vmatpush.msra.mxu0 %v226
    %234 = vmatpush.msra.mxu0 %v225
    %235 = vmatpush.msra.mxu0 %v224
    %236 = vmatpush.msra.mxu0 %v223
    %237 = vmatpush.msra.mxu0 %v222
    %238 = vmatpush.msra.mxu0 %v221
    %239 = vmatpush.msra.mxu0 %v220
    %240 = vmatpush.msra.mxu0 %v219
    %241 = vmatpush.msra.mxu0 %v218
    %242 = vmatpush.msra.mxu0 %v217
    %243 = vmatpush.msra.mxu0 %v216
    %244 = vmatpush.msra.mxu0 %v215
    %245 = vmatpush.msra.mxu0 %v214
    %246 = vmatpush.msra.mxu0 %v213
    %247 = vmatpush.msra.mxu0 %v212
    %248 = vmatmul.f32.gmra.mxu0 %v208
    %v249 = vpop.f32.mrf.mxu0
    %v250 = vadd.f32 %v230, %v249
    %251 = vmatmul.f32.gmra.mxu0 %v209
    %v252 = vpop.f32.mrf.mxu0
    %v253 = vadd.f32 %v230, %v252
    %254 = vmatmul.f32.gmra.mxu0 %v210
    %v255 = vpop.f32.mrf.mxu0
    %v256 = vadd.f32 %v230, %v255
    %257 = vmatmul.f32.gmra.mxu0 %v211
    %v258 = vpop.f32.mrf.mxu0
    %v259 = vadd.f32 %v230, %v258
    %260 = vdwg.mxu0
    %v261 = vmax.f32 %v250, 0.0
    %v262 = vmax.f32 %v253, 0.0
    %v263 = vmax.f32 %v256, 0.0
    %v264 = vmax.f32 %v259, 0.0
    %v265 = vld [vmem:[%s4] sm:$0xff]
    %v266 = vld [vmem:[%s4 + $0x8] sm:$0xff]
    %v267 = vld [vmem:[%s4 + $0x10] sm:$0xff]
    %v268 = vld [vmem:[%s4 + $0x18] sm:$0xff]
    %v269 = vmul.f32 %v261, %v265
    %v270 = vmul.f32 %v262, %v266
    %v271 = vmul.f32 %v263, %v267
    %v272 = vmul.f32 %v264, %v268
    %v273 = vld [vmem:[%s5] sm:$0x3]
    %v275 = vsel %vm197, %v273, 0
    %277 = vmatpush.msra.mxu0 0.0
    %278 = vmatpush.msra.mxu0 0.0
    %279 = vmatpush.msra.mxu0 0.0
    %280 = vmatpush.msra.mxu0 0.0
    %281 = vmatpush.msra.mxu0 0.0
    %282 = vmatpush.msra.mxu0 0.0
    %283 = vmatpush.msra.mxu0 0.0
    %284 = vmatpush.msra.mxu0 0.0
    %285 = vmatpush.msra.mxu0 0.0
    %286 = vmatpush.msra.mxu0 0.0
    %287 = vmatpush.msra.mxu0 0.0
    %288 = vmatpush.msra.mxu0 0.0
    %289 = vmatpush.msra.mxu0 %v272
    %290 = vmatpush.msra.mxu0 %v271
    %291 = vmatpush.msra.mxu0 %v270
    %292 = vmatpush.msra.mxu0 %v269
    %293 = vmatmul.f32.gmra.mxu0 %v275
    %v294 = vpop.f32.mrf.mxu0
    %v295 = vadd.f32 0.0, %v294
    %296 = vdwg.mxu0
    %v297 = vld [vmem:[%s6] sm:$0xff]
    %v298 = vld [vmem:[%s6 + $0x8] sm:$0xff]
    %v299 = vld [vmem:[%s6 + $0x10] sm:$0xff]
    %v300 = vld [vmem:[%s7] sm:$0x1]
    %v302 = vperm.slane %v300, 0
    %vm304 = vcmask 195584
    %v306 = vsel %vm304, %v295, 0
    %308 = vmatpush.msra.mxu0 0.0
    %309 = vmatpush.msra.mxu0 0.0
    %310 = vmatpush.msra.mxu0 0.0
    %311 = vmatpush.msra.mxu0 0.0
    %312 = vmatpush.msra.mxu0 0.0
    %313 = vmatpush.msra.mxu0 0.0
    %314 = vmatpush.msra.mxu0 0.0
    %315 = vmatpush.msra.mxu0 0.0
    %316 = vmatpush.msra.mxu0 0.0
    %317 = vmatpush.msra.mxu0 0.0
    %318 = vmatpush.msra.mxu0 0.0
    %319 = vmatpush.msra.mxu0 0.0
    %320 = vmatpush.msra.mxu0 0.0
    %321 = vmatpush.msra.mxu0 %v299
    %322 = vmatpush.msra.mxu0 %v298
    %323 = vmatpush.msra.mxu0 %v297
    %324 = vmatmul.f32.gmra.mxu0 %v306
    %v325 = vpop.f32.mrf.mxu0
    %v326 = vadd.f32 %v302, %v325
    %327 = vdwg.mxu0
    %vm328 = vcmask 25600
    %329 = vst.msk [vmem:[#allocation2] sm:$0x3] %vm328, %v326
    // Predicated region
    $region34: #{tpu_custom_call.1} parent=1 // pred_check
      _
    $region35: #{tpu_custom_call.1} parent=1 // pred_check_branch
      %331 = sbr.rel (0) target = $region37
    $region36: #{tpu_custom_call.1} parent=1 // pred_region
      %333 = vsyncadd [#allocation3], 0
      %s335 = sshll.u32 [#allocation2], 4
      %s336 = int_to_ptr.vmem [resolvable:$true] %s335
      %s337 = sshll.u32 %s8, 4
      %s338 = int_to_ptr.hbm [resolvable:$true] %s337
      %340 = dma.vmem_to_hbm [thread:$0]  %s336, 32, %s338, [#allocation3]
    $region37: #{tpu_custom_call.1} parent=1 // pred_fallthru
      _
    // Predicated region
    $region38: #{tpu_custom_call.1} parent=1 // pred_check
      _
    $region39: #{tpu_custom_call.1} parent=1 // pred_check_branch
      %342 = sbr.rel (0) target = $region41
    $region40: #{tpu_custom_call.1} parent=1 // pred_region
      %344 = dma.done [#allocation3], 32
    $region41: #{tpu_custom_call.1} parent=1 // pred_fallthru
      _
    %345 = vsyncpa [#allocation3], 1

</llo_original>
